<compile_context>
chip_gen: v6e
topology: v6e:2x2x1
jax: 0.10.0
libtpu: 0.0.40
codegen_flags: <defaults>
</compile_context>

<pallas_src>
import jax
import jax.numpy as jnp
from jax.experimental import pallas as pl
from jax.experimental.pallas import tpu as pltpu


def _round_up(x, m):
    return ((x + m - 1) // m) * m


def _cdiv(a, b):
    return (a + b - 1) // b


def _vmem_capacity_bytes():
    """Physical VMEM per TensorCore; conservative (v7x) default if query fails."""
    try:
        info = pltpu.get_tpu_info()
        cap = getattr(info, "vmem_capacity_bytes", None)
        if cap:
            return int(cap)
    except Exception:
        pass
    return 64 * 1024 * 1024


def _make_gate_kernel(tn, col_tiled, low_precision_blend):
    def kernel(intra_ref, inter_ref, wa_ref, wv_ref, b_ref, o_ref):
        intra = intra_ref[...]                              # (tm, D), native dtype
        inter = inter_ref[...]                              # (tm, D), native dtype

        # Fused pre-activation: A(inter) + V(intra) + b_V, f32 accumulation on MXU.
        pre = jnp.dot(inter, wa_ref[...], preferred_element_type=jnp.float32)
        pre = pre + jnp.dot(intra, wv_ref[...], preferred_element_type=jnp.float32)
        pre = pre + b_ref[...]                              # (1, tn) f32 bias
        g = jax.nn.sigmoid(pre)                             # weight_G, f32 (EUP)

        if col_tiled:
            # Column axis is the OUTER grid axis; pick the matching columns of
            # the full-width input tiles for the blend tail.
            col = pl.multiple_of(pl.program_id(0) * tn, tn)
            intra_c = intra_ref[:, pl.ds(col, tn)]
            inter_c = inter_ref[:, pl.ds(col, tn)]
        else:
            intra_c, inter_c = intra, inter

        if low_precision_blend:
            # Native-dtype blend tail (bf16 on v6e/v7x): halves VPU traffic.
            g = g.astype(o_ref.dtype)
            out = intra_c + (inter_c - intra_c) * g         # convex blend, 1 mul
        else:
            intra_f = intra_c.astype(jnp.float32)
            inter_f = inter_c.astype(jnp.float32)
            out = intra_f + (inter_f - intra_f) * g
        o_ref[...] = out.astype(o_ref.dtype)

    return kernel


def gate_forward(intra_f, inter_f, wa, wv, bv, *, tm=None):
    """intra_f, inter_f: (B, S, D).  wa: A_affline.weight (D, D) [no bias].
    wv / bv: V_affline.weight (D, D) / V_affline.bias (D,).  Returns (B, S, D)."""
    B, S, D = intra_f.shape
    M = B * S
    dtype = intra_f.dtype
    itemsize = jnp.dtype(dtype).itemsize
    sub = 8 * max(1, 4 // itemsize)           # sublane granularity: 8 f32 / 16 bf16

    vmem_cap = _vmem_capacity_bytes()
    small_vmem = vmem_cap <= 64 * 1024 * 1024   # v7x-like (64 MiB / TC)

    # ---- row tile: generation aware + aim for >= ~8 row steps when M allows ----
    if tm is None:
        tm = 256 if small_vmem else 512
    tm_eff = min(tm, _round_up(M, sub), max(64, _round_up(_cdiv(M, 8), sub)))
    tm_eff = max(_round_up(tm_eff, sub), sub)
    row_steps = _cdiv(M, tm_eff)

    # ---- column tiling of weights for large, lane-aligned D ----
    weight_budget = (12 if small_vmem else 24) * 1024 * 1024
    col_tiled = (D % 128 == 0) and (2 * D * D * itemsize > weight_budget)
    if col_tiled:
        tn = 128
        for cand in (1024, 512, 256, 128):
            if D % cand == 0 and 2 * 2 * D * cand * itemsize <= weight_budget:
                tn = cand
                break
        col_steps = D // tn
    else:
        tn = D
        col_steps = 1

    low_precision_blend = dtype != jnp.float32
    kernel = _make_gate_kernel(tn, col_tiled, low_precision_blend)

    # ---- operands: pure reshapes, no padding, no trailing slice ----
    intra2d = intra_f.reshape(M, D)
    inter2d = inter_f.reshape(M, D)
    # PyTorch Linear weight is (out, in) -> transpose to (in, out) for x @ W.
    # Deliberately fed to the MXU in the native activation dtype (f32 acc).
    wa_t = wa.T.astype(dtype)
    wv_t = wv.T.astype(dtype)
    b2d = bv.reshape(1, D).astype(jnp.float32)

    def build_call(single_buffer_resident):
        resident_kw = {"pipeline_mode": pl.Buffered(1)} if single_buffer_resident else {}
        if col_tiled:
            grid = (col_steps, row_steps)          # columns outer: weights streamed once
            row_in_spec = pl.BlockSpec((tm_eff, D), lambda j, i: (i, 0))
            w_spec = pl.BlockSpec((D, tn), lambda j, i: (0, j))
            bias_spec = pl.BlockSpec((1, tn), lambda j, i: (0, j))
            out_spec = pl.BlockSpec((tm_eff, tn), lambda j, i: (i, j))
            semantics = ("parallel", "parallel")
            w_buf = b_buf = 2
        else:
            grid = (row_steps,)
            row_in_spec = pl.BlockSpec((tm_eff, D), lambda i: (i, 0))
            w_spec = pl.BlockSpec((D, D), lambda i: (0, 0), **resident_kw)
            bias_spec = pl.BlockSpec((1, D), lambda i: (0, 0), **resident_kw)
            out_spec = pl.BlockSpec((tm_eff, D), lambda i: (i, 0))
            semantics = ("parallel",)
            w_buf = b_buf = 1 if single_buffer_resident else 2

        # ---- explicit VMEM budget: in/out tiles + weights + bias + f32 temps ----
        vmem_needed = (
            2 * 2 * tm_eff * D * itemsize          # intra/inter tiles, double buffered
            + 2 * tm_eff * tn * itemsize           # output tile, double buffered
            + w_buf * 2 * D * tn * itemsize        # both weight tiles
            + b_buf * tn * 4                       # bias (f32)
            + 4 * tm_eff * tn * 4                  # f32 temporaries (pre, g, blend)
        )
        cap = min(int(vmem_cap * 0.8), vmem_cap - 16 * 1024 * 1024)
        vmem_limit = int(min(cap, max(32 * 1024 * 1024, int(1.5 * vmem_needed))))

        return pl.pallas_call(
            kernel,
            out_shape=jax.ShapeDtypeStruct((M, D), dtype),
            grid_spec=pltpu.PrefetchScalarGridSpec(
                num_scalar_prefetch=0,
                grid=grid,
                in_specs=[row_in_spec, row_in_spec, w_spec, w_spec, bias_spec],
                out_specs=out_spec,
            ),
            compiler_params=pltpu.CompilerParams(
                dimension_semantics=semantics,
                vmem_limit_bytes=vmem_limit,
            ),
        )

    args = (intra2d, inter2d, wa_t, wv_t, b2d)
    if col_tiled:
        out2d = build_call(False)(*args)
    else:
        try:
            # Single-buffer the constant-index weights/bias (VMEM saving).
            out2d = build_call(True)(*args)
        except Exception:
            # pipeline_mode=pl.Buffered(1) not supported on this jax build.
            out2d = build_call(False)(*args)

    return out2d.reshape(B, S, D)


def gate_reference(intra_f, inter_f, wa, wv, bv):
    a = jnp.einsum("bsd,od->bso", inter_f, wa)
    v = jnp.einsum("bsd,od->bso", intra_f, wv) + bv
    g = jax.nn.sigmoid(a + v)
    return inter_f * g + intra_f * (1.0 - g)


if __name__ == "__main__":
    B, S, D = 2, 8, 32
    key = jax.random.PRNGKey(0)
    k1, k2, k3, k4, k5 = jax.random.split(key, 5)

    intra_f = jax.random.normal(k1, (B, S, D), dtype=jnp.float32)
    inter_f = jax.random.normal(k2, (B, S, D), dtype=jnp.float32)

    # Deterministic parameter init (PyTorch Linear weight shape: (out, in)).
    bound = 1.0 / (D ** 0.5)
    wa = jax.random.uniform(k3, (D, D), jnp.float32, -bound, bound)  # A_affline.weight (no bias)
    wv = jax.random.uniform(k4, (D, D), jnp.float32, -bound, bound)  # V_affline.weight
    bv = jax.random.uniform(k5, (D,), jnp.float32, -bound, bound)    # V_affline.bias

    out = gate_forward(intra_f, inter_f, wa, wv, bv)
    out = jax.block_until_ready(out)

    ref = gate_reference(intra_f, inter_f, wa, wv, bv)
    assert out.shape == (B, S, D)
    assert jnp.allclose(out, ref, atol=1e-5, rtol=1e-5)

    print("KERNEL_OK")
</pallas_src>

<mosaic_0001>
module attributes {stable_mosaic.version = 11 : i64} {
  func.func @kernel(%arg0: i32, %arg1: memref<16x32xf32, #tpu.memory_space<vmem>>, %arg2: memref<16x32xf32, #tpu.memory_space<vmem>>, %arg3: memref<32x32xf32, #tpu.memory_space<vmem>>, %arg4: memref<32x32xf32, #tpu.memory_space<vmem>>, %arg5: memref<1x32xf32, #tpu.memory_space<vmem>>, %arg6: memref<16x32xf32, #tpu.memory_space<vmem>>) attributes {dimension_semantics = [#tpu.dimension_semantics<parallel>], iteration_bounds = array<i64: 1>, scalar_prefetch = 0 : i64, scratch_operands = 0 : i64, tpu.core_type = #tpu.core_type<tc>, window_params = [{transform_indices = @transform_0, window_bounds = array<i64: 16, 32>}, {transform_indices = @transform_1, window_bounds = array<i64: 16, 32>}, {pipeline_mode = #tpu.pipeline_mode<synchronous>, transform_indices = @transform_2, window_bounds = array<i64: 32, 32>}, {pipeline_mode = #tpu.pipeline_mode<synchronous>, transform_indices = @transform_3, window_bounds = array<i64: 32, 32>}, {pipeline_mode = #tpu.pipeline_mode<synchronous>, transform_indices = @transform_4, window_bounds = array<i64: 1, 32>}, {transform_indices = @transform_5, window_bounds = array<i64: 16, 32>}]} {
    %c0 = arith.constant 0 : index
    %c0_0 = arith.constant 0 : index
    %0 = vector.load %arg1[%c0, %c0_0] : memref<16x32xf32, #tpu.memory_space<vmem>>, vector<16x32xf32>
    %c0_1 = arith.constant 0 : index
    %c0_2 = arith.constant 0 : index
    %1 = vector.load %arg2[%c0_1, %c0_2] : memref<16x32xf32, #tpu.memory_space<vmem>>, vector<16x32xf32>
    %c0_3 = arith.constant 0 : index
    %c0_4 = arith.constant 0 : index
    %2 = vector.load %arg3[%c0_3, %c0_4] : memref<32x32xf32, #tpu.memory_space<vmem>>, vector<32x32xf32>
    %cst = arith.constant dense<0.000000e+00> : vector<16x32xf32>
    %3 = tpu.matmul %1, %2, %cst {dimension_numbers = #tpu.dot_dimension_numbers<[1], [0], [0], [1], [0, 0, 1, 1], [], []>} : vector<16x32xf32>, vector<32x32xf32>, vector<16x32xf32> -> vector<16x32xf32>
    %c0_5 = arith.constant 0 : index
    %c0_6 = arith.constant 0 : index
    %4 = vector.load %arg4[%c0_5, %c0_6] : memref<32x32xf32, #tpu.memory_space<vmem>>, vector<32x32xf32>
    %cst_7 = arith.constant dense<0.000000e+00> : vector<16x32xf32>
    %5 = tpu.matmul %0, %4, %cst_7 {dimension_numbers = #tpu.dot_dimension_numbers<[1], [0], [0], [1], [0, 0, 1, 1], [], []>} : vector<16x32xf32>, vector<32x32xf32>, vector<16x32xf32> -> vector<16x32xf32>
    %6 = arith.addf %3, %5 : vector<16x32xf32>
    %c0_8 = arith.constant 0 : index
    %c0_9 = arith.constant 0 : index
    %7 = vector.load %arg5[%c0_8, %c0_9] : memref<1x32xf32, #tpu.memory_space<vmem>>, vector<1x32xf32>
    %8 = vector.broadcast %7 : vector<1x32xf32> to vector<16x32xf32>
    %9 = arith.addf %6, %8 : vector<16x32xf32>
    %10 = arith.negf %9 : vector<16x32xf32>
    %11 = math.exp %10 : vector<16x32xf32>
    %cst_10 = arith.constant 1.000000e+00 : f32
    %12 = vector.broadcast %cst_10 : f32 to vector<16x32xf32>
    %13 = arith.addf %12, %11 : vector<16x32xf32>
    %14 = arith.divf %12, %13 : vector<16x32xf32>
    %15 = arith.subf %1, %0 : vector<16x32xf32>
    %16 = arith.mulf %15, %14 : vector<16x32xf32>
    %17 = arith.addf %0, %16 : vector<16x32xf32>
    %c0_11 = arith.constant 0 : index
    %c0_12 = arith.constant 0 : index
    %18 = vector.load %arg6[%c0_11, %c0_12] : memref<16x32xf32, #tpu.memory_space<vmem>>, vector<16x32xf32>
    tpu.vector_store %arg6[%c0_11, %c0_12], %17 {strides = array<i32>} : memref<16x32xf32, #tpu.memory_space<vmem>>, vector<16x32xf32>,
    return
  }
  func.func @transform_0(%arg0: i32) -> (i32, i32) {
    %c0_i32 = arith.constant 0 : i32
    %c0_i32_0 = arith.constant 0 : i32
    return %arg0, %c0_i32 : i32, i32
  }
  func.func @transform_1(%arg0: i32) -> (i32, i32) {
    %c0_i32 = arith.constant 0 : i32
    %c0_i32_0 = arith.constant 0 : i32
    return %arg0, %c0_i32 : i32, i32
  }
  func.func @transform_2(%arg0: i32) -> (i32, i32) {
    %c0_i32 = arith.constant 0 : i32
    %c0_i32_0 = arith.constant 0 : i32
    %c0_i32_1 = arith.constant 0 : i32
    return %c0_i32, %c0_i32_0 : i32, i32
  }
  func.func @transform_3(%arg0: i32) -> (i32, i32) {
    %c0_i32 = arith.constant 0 : i32
    %c0_i32_0 = arith.constant 0 : i32
    %c0_i32_1 = arith.constant 0 : i32
    return %c0_i32, %c0_i32_0 : i32, i32
  }
  func.func @transform_4(%arg0: i32) -> (i32, i32) {
    %c0_i32 = arith.constant 0 : i32
    %c0_i32_0 = arith.constant 0 : i32
    %c0_i32_1 = arith.constant 0 : i32
    return %c0_i32, %c0_i32_0 : i32, i32
  }
  func.func @transform_5(%arg0: i32) -> (i32, i32) {
    %c0_i32 = arith.constant 0 : i32
    %c0_i32_0 = arith.constant 0 : i32
    return %arg0, %c0_i32 : i32, i32
  }
}

module attributes {stable_mosaic.version = 11 : i64} {
  func.func @kernel(%arg0: i32, %arg1: memref<16x32xf32, #tpu.memory_space<vmem>>, %arg2: memref<16x32xf32, #tpu.memory_space<vmem>>, %arg3: memref<32x32xf32, #tpu.memory_space<vmem>>, %arg4: memref<32x32xf32, #tpu.memory_space<vmem>>, %arg5: memref<1x32xf32, #tpu.memory_space<vmem>>, %arg6: memref<16x32xf32, #tpu.memory_space<vmem>>) attributes {dimension_semantics = [#tpu.dimension_semantics<parallel>], iteration_bounds = array<i64: 1>, scalar_prefetch = 0 : i64, scratch_operands = 0 : i64, tpu.core_type = #tpu.core_type<tc>, window_params = [{transform_indices = @transform_0, window_bounds = array<i64: 16, 32>}, {transform_indices = @transform_1, window_bounds = array<i64: 16, 32>}, {pipeline_mode = #tpu.pipeline_mode<synchronous>, transform_indices = @transform_2, window_bounds = array<i64: 32, 32>}, {pipeline_mode = #tpu.pipeline_mode<synchronous>, transform_indices = @transform_3, window_bounds = array<i64: 32, 32>}, {pipeline_mode = #tpu.pipeline_mode<synchronous>, transform_indices = @transform_4, window_bounds = array<i64: 1, 32>}, {transform_indices = @transform_5, window_bounds = array<i64: 16, 32>}]} {
    %c0 = arith.constant 0 : index
    %c0_0 = arith.constant 0 : index
    %0 = vector.load %arg1[%c0, %c0_0] : memref<16x32xf32, #tpu.memory_space<vmem>>, vector<16x32xf32>
    %c0_1 = arith.constant 0 : index
    %c0_2 = arith.constant 0 : index
    %1 = vector.load %arg2[%c0_1, %c0_2] : memref<16x32xf32, #tpu.memory_space<vmem>>, vector<16x32xf32>
    %c0_3 = arith.constant 0 : index
    %c0_4 = arith.constant 0 : index
    %2 = vector.load %arg3[%c0_3, %c0_4] : memref<32x32xf32, #tpu.memory_space<vmem>>, vector<32x32xf32>
    %cst = arith.constant dense<0.000000e+00> : vector<16x32xf32>
    %3 = tpu.matmul %1, %2, %cst {dimension_numbers = #tpu.dot_dimension_numbers<[1], [0], [0], [1], [0, 0, 1, 1], [], []>} : vector<16x32xf32>, vector<32x32xf32>, vector<16x32xf32> -> vector<16x32xf32>
    %c0_5 = arith.constant 0 : index
    %c0_6 = arith.constant 0 : index
    %4 = vector.load %arg4[%c0_5, %c0_6] : memref<32x32xf32, #tpu.memory_space<vmem>>, vector<32x32xf32>
    %cst_7 = arith.constant dense<0.000000e+00> : vector<16x32xf32>
    %5 = tpu.matmul %0, %4, %cst_7 {dimension_numbers = #tpu.dot_dimension_numbers<[1], [0], [0], [1], [0, 0, 1, 1], [], []>} : vector<16x32xf32>, vector<32x32xf32>, vector<16x32xf32> -> vector<16x32xf32>
    %6 = arith.addf %3, %5 : vector<16x32xf32>
    %c0_8 = arith.constant 0 : index
    %c0_9 = arith.constant 0 : index
    %7 = vector.load %arg5[%c0_8, %c0_9] : memref<1x32xf32, #tpu.memory_space<vmem>>, vector<1x32xf32>
    %8 = vector.broadcast %7 : vector<1x32xf32> to vector<16x32xf32>
    %9 = arith.addf %6, %8 : vector<16x32xf32>
    %10 = arith.negf %9 : vector<16x32xf32>
    %11 = math.exp %10 : vector<16x32xf32>
    %cst_10 = arith.constant 1.000000e+00 : f32
    %12 = vector.broadcast %cst_10 : f32 to vector<16x32xf32>
    %13 = arith.addf %12, %11 : vector<16x32xf32>
    %14 = arith.divf %12, %13 : vector<16x32xf32>
    %15 = arith.subf %1, %0 : vector<16x32xf32>
    %16 = arith.mulf %15, %14 : vector<16x32xf32>
    %17 = arith.addf %0, %16 : vector<16x32xf32>
    %c0_11 = arith.constant 0 : index
    %c0_12 = arith.constant 0 : index
    %18 = vector.load %arg6[%c0_11, %c0_12] : memref<16x32xf32, #tpu.memory_space<vmem>>, vector<16x32xf32>
    tpu.vector_store %arg6[%c0_11, %c0_12], %17 {strides = array<i32>} : memref<16x32xf32, #tpu.memory_space<vmem>>, vector<16x32xf32>,
    return
  }
  func.func @transform_0(%arg0: i32) -> (i32, i32) {
    %c0_i32 = arith.constant 0 : i32
    %c0_i32_0 = arith.constant 0 : i32
    return %arg0, %c0_i32 : i32, i32
  }
  func.func @transform_1(%arg0: i32) -> (i32, i32) {
    %c0_i32 = arith.constant 0 : i32
    %c0_i32_0 = arith.constant 0 : i32
    return %arg0, %c0_i32 : i32, i32
  }
  func.func @transform_2(%arg0: i32) -> (i32, i32) {
    %c0_i32 = arith.constant 0 : i32
    %c0_i32_0 = arith.constant 0 : i32
    %c0_i32_1 = arith.constant 0 : i32
    return %c0_i32, %c0_i32_0 : i32, i32
  }
  func.func @transform_3(%arg0: i32) -> (i32, i32) {
    %c0_i32 = arith.constant 0 : i32
    %c0_i32_0 = arith.constant 0 : i32
    %c0_i32_1 = arith.constant 0 : i32
    return %c0_i32, %c0_i32_0 : i32, i32
  }
  func.func @transform_4(%arg0: i32) -> (i32, i32) {
    %c0_i32 = arith.constant 0 : i32
    %c0_i32_0 = arith.constant 0 : i32
    %c0_i32_1 = arith.constant 0 : i32
    return %c0_i32, %c0_i32_0 : i32, i32
  }
  func.func @transform_5(%arg0: i32) -> (i32, i32) {
    %c0_i32 = arith.constant 0 : i32
    %c0_i32_0 = arith.constant 0 : i32
    return %arg0, %c0_i32 : i32, i32
  }
}

</mosaic_0001>

<llo_original>
// kernel: tpu_custom_call.1
$region0: #{tpu_custom_call.1}
  #allocation0 [shape = 'u32[]', space=smem, size = 0x4, offset = 0x4, fixed_abs, tag = 'smem constant byte address 0x4 - core index']
  #allocation1 [shape = 'u32[144,128]{1,0:T(1,128)}', space=vmem, size = 0x12000, scoped, tag = 'internal scratch']
  %s0 = inlined_call_operand.hbm [shape: f32[16,32], index: 0, kind: input, shape index: {}]
  %s1 = inlined_call_operand.hbm [shape: f32[16,32], index: 1, kind: input, shape index: {}]
  %s2 = inlined_call_operand.hbm [shape: f32[32,32], index: 2, kind: input, shape index: {}]
  %s3 = inlined_call_operand.hbm [shape: f32[32,32], index: 3, kind: input, shape index: {}]
  %s4 = inlined_call_operand.vmem [shape: f32[1,32], index: 4, kind: input, shape index: {}]
  %s5 = inlined_call_operand.hbm [shape: f32[16,32], index: 5, kind: output, shape index: {}]
  %s6 = sld [smem:[#allocation0]]
  $region46: #{tpu_custom_call.1} parent=0
    _
  %s8 = ssub.s32 1, %s6
  %s9 = scalar_select 0, %s8, %s6
  $region1: #{tpu_custom_call.1} parent=0
    #allocation2 [shape = 'u8[8192]{0}', space=vmem, size = 0x2000, scoped, tag = 'input window, operand 0, single buffered']
    #allocation3 [shape = 's32[1]{0}', space=sflag, size = 0x4, scoped, tag = 'scoped memory for tpu_custom_call.1']
    #allocation4 [shape = 's32[1]{0}', space=sflag, size = 0x4, scoped, tag = 'scoped memory for tpu_custom_call.1']
    #allocation5 [shape = 'u8[8192]{0}', space=vmem, size = 0x2000, scoped, tag = 'input window, operand 1, single buffered']
    #allocation6 [shape = 's32[1]{0}', space=sflag, size = 0x4, scoped, tag = 'scoped memory for tpu_custom_call.1']
    #allocation7 [shape = 'u8[16384]{0}', space=vmem, size = 0x4000, scoped, tag = 'input window, operand 2, single buffered']
    #allocation8 [shape = 'u8[16384]{0}', space=vmem, size = 0x4000, scoped, tag = 'input window, operand 3, single buffered']
    #allocation9 [shape = 's32[1]{0}', space=sflag, size = 0x4, scoped, tag = 'scoped memory for tpu_custom_call.1']
    #allocation10 [shape = 'u8[8192]{0}', space=vmem, size = 0x2000, scoped, tag = 'output window, operand 0, single buffered']
    %10 = vsyncpa [#allocation3], 0
    %11 = vsyncpa [#allocation6], 0
    %12 = vsyncpa [#allocation9], 0
    %13 = vsyncpa [#allocation4], 0
    // Predicated region
    $region2: #{tpu_custom_call.1} parent=1 // pred_check
      _
    $region3: #{tpu_custom_call.1} parent=1 // pred_check_branch
      %15 = sbr.rel (0) target = $region5
    $region4: #{tpu_custom_call.1} parent=1 // pred_region
      %s17 = ssub.s32 256, 256
      %18 = vsyncadd [#allocation3], %s17
      %s19 = sshll.u32 [#allocation2], 4
      %s20 = int_to_ptr.vmem [resolvable:$true] %s19
      %25 = dma.hbm_to_vmem [thread:$0]  %s0, 256, %s20, [#allocation3], 128, 128, 8
    $region5: #{tpu_custom_call.1} parent=1 // pred_fallthru
      _
    // Predicated region
    $region6: #{tpu_custom_call.1} parent=1 // pred_check
      _
    $region7: #{tpu_custom_call.1} parent=1 // pred_check_branch
      %27 = sbr.rel (0) target = $region9
    $region8: #{tpu_custom_call.1} parent=1 // pred_region
      %s29 = ssub.s32 256, 256
      %30 = vsyncadd [#allocation6], %s29
      %s31 = sshll.u32 [#allocation5], 4
      %s32 = int_to_ptr.vmem [resolvable:$true] %s31
      %37 = dma.hbm_to_vmem [thread:$0]  %s1, 256, %s32, [#allocation6], 128, 128, 8
    $region9: #{tpu_custom_call.1} parent=1 // pred_fallthru
      _
    // Predicated region
    $region10: #{tpu_custom_call.1} parent=1 // pred_check
      _
    $region11: #{tpu_custom_call.1} parent=1 // pred_check_branch
      %39 = sbr.rel (0) target = $region13
    $region12: #{tpu_custom_call.1} parent=1 // pred_region
      %s41 = ssub.s32 512, 512
      %42 = vsyncadd [#allocation6], %s41
      %s43 = sshll.u32 [#allocation7], 4
      %s44 = int_to_ptr.vmem [resolvable:$true] %s43
      %49 = dma.hbm_to_vmem [thread:$0]  %s2, 512, %s44, [#allocation6], 128, 128, 8
    $region13: #{tpu_custom_call.1} parent=1 // pred_fallthru
      _
    // Predicated region
    $region14: #{tpu_custom_call.1} parent=1 // pred_check
      _
    $region15: #{tpu_custom_call.1} parent=1 // pred_check_branch
      %51 = sbr.rel (0) target = $region17
    $region16: #{tpu_custom_call.1} parent=1 // pred_region
      %s53 = ssub.s32 512, 512
      %54 = vsyncadd [#allocation9], %s53
      %s55 = sshll.u32 [#allocation8], 4
      %s56 = int_to_ptr.vmem [resolvable:$true] %s55
      %61 = dma.hbm_to_vmem [thread:$0]  %s3, 512, %s56, [#allocation9], 128, 128, 8
    $region17: #{tpu_custom_call.1} parent=1 // pred_fallthru
      _
    // Predicated region
    $region18: #{tpu_custom_call.1} parent=1 // pred_check
      _
    $region19: #{tpu_custom_call.1} parent=1 // pred_check_branch
      %63 = sbr.rel (0) target = $region21
    $region20: #{tpu_custom_call.1} parent=1 // pred_region
      _
    $region21: #{tpu_custom_call.1} parent=1 // pred_fallthru
      _
    // Predicated region
    $region22: #{tpu_custom_call.1} parent=1 // pred_check
      _
    $region23: #{tpu_custom_call.1} parent=1 // pred_check_branch
      %65 = sbr.rel (0) target = $region25
    $region24: #{tpu_custom_call.1} parent=1 // pred_region
      %66 = dma.done [#allocation3], 256
    $region25: #{tpu_custom_call.1} parent=1 // pred_fallthru
      _
    // Predicated region
    $region26: #{tpu_custom_call.1} parent=1 // pred_check
      _
    $region27: #{tpu_custom_call.1} parent=1 // pred_check_branch
      %68 = sbr.rel (0) target = $region29
    $region28: #{tpu_custom_call.1} parent=1 // pred_region
      %69 = dma.done [#allocation6], 256
    $region29: #{tpu_custom_call.1} parent=1 // pred_fallthru
      _
    // Predicated region
    $region30: #{tpu_custom_call.1} parent=1 // pred_check
      _
    $region31: #{tpu_custom_call.1} parent=1 // pred_check_branch
      %71 = sbr.rel (0) target = $region33
    $region32: #{tpu_custom_call.1} parent=1 // pred_region
      %72 = dma.done [#allocation6], 512
    $region33: #{tpu_custom_call.1} parent=1 // pred_fallthru
      _
    // Predicated region
    $region34: #{tpu_custom_call.1} parent=1 // pred_check
      _
    $region35: #{tpu_custom_call.1} parent=1 // pred_check_branch
      %74 = sbr.rel (0) target = $region37
    $region36: #{tpu_custom_call.1} parent=1 // pred_region
      %75 = dma.done [#allocation9], 512
    $region37: #{tpu_custom_call.1} parent=1 // pred_fallthru
      _
    %v76 = vld [vmem:[#allocation2] sm:$0xff]
    %v77 = vld [vmem:[#allocation2 + $0x8] sm:$0xff]
    %v78 = vld [vmem:[#allocation5] sm:$0xff]
    %v79 = vld [vmem:[#allocation5 + $0x8] sm:$0xff]
    %v80 = vld [vmem:[#allocation7] sm:$0xff]
    %v81 = vld [vmem:[#allocation7 + $0x8] sm:$0xff]
    %v82 = vld [vmem:[#allocation7 + $0x10] sm:$0xff]
    %v83 = vld [vmem:[#allocation7 + $0x18] sm:$0xff]
    %v84 = vld [vmem:[#allocation8] sm:$0xff]
    %v85 = vld [vmem:[#allocation8 + $0x8] sm:$0xff]
    %v86 = vld [vmem:[#allocation8 + $0x10] sm:$0xff]
    %v87 = vld [vmem:[#allocation8 + $0x18] sm:$0xff]
    %vm88 = vcmask 261120
    %v90 = vsel %vm88, %v76, 0
    %v93 = vsel %vm88, %v77, 0
    %95 = vmatprep.subr.mxu0 0.0
    %96 = vmatpush1.msra.mxu0 0.0
    %97 = vmatprep.subr.mxu0 0.0
    %98 = vmatpush1.msra.mxu0 0.0
    %99 = vmatprep.subr.mxu0 0.0
    %100 = vmatpush1.msra.mxu0 0.0
    %101 = vmatprep.subr.mxu0 0.0
    %102 = vmatpush1.msra.mxu0 0.0
    %103 = vmatprep.subr.mxu0 0.0
    %104 = vmatpush1.msra.mxu0 0.0
    %105 = vmatprep.subr.mxu0 0.0
    %106 = vmatpush1.msra.mxu0 0.0
    %107 = vmatprep.subr.mxu0 0.0
    %108 = vmatpush1.msra.mxu0 0.0
    %109 = vmatprep.subr.mxu0 0.0
    %110 = vmatpush1.msra.mxu0 0.0
    %111 = vmatprep.subr.mxu0 0.0
    %112 = vmatpush1.msra.mxu0 0.0
    %113 = vmatprep.subr.mxu0 0.0
    %114 = vmatpush1.msra.mxu0 0.0
    %115 = vmatprep.subr.mxu0 0.0
    %116 = vmatpush1.msra.mxu0 0.0
    %117 = vmatprep.subr.mxu0 0.0
    %118 = vmatpush1.msra.mxu0 0.0
    %119 = vmatprep.subr.mxu0 0.0
    %120 = vmatpush1.msra.mxu0 %v87
    %121 = vmatprep.subr.mxu0 0.0
    %122 = vmatpush1.msra.mxu0 %v86
    %123 = vmatprep.subr.mxu0 0.0
    %124 = vmatpush1.msra.mxu0 %v85
    %125 = vmatprep.subr.mxu0 0.0
    %126 = vmatpush1.msra.mxu0 %v84
    %127 = vmatprep.subr.mxu0 0.0
    %128 = vmatpush2.msra.mxu0 0.0
    %129 = vmatprep.subr.mxu0 0.0
    %130 = vmatpush2.msra.mxu0 0.0
    %131 = vmatprep.subr.mxu0 0.0
    %132 = vmatpush2.msra.mxu0 0.0
    %133 = vmatprep.subr.mxu0 0.0
    %134 = vmatpush2.msra.mxu0 0.0
    %135 = vmatprep.subr.mxu0 0.0
    %136 = vmatpush2.msra.mxu0 0.0
    %137 = vmatprep.subr.mxu0 0.0
    %138 = vmatpush2.msra.mxu0 0.0
    %139 = vmatprep.subr.mxu0 0.0
    %140 = vmatpush2.msra.mxu0 0.0
    %141 = vmatprep.subr.mxu0 0.0
    %142 = vmatpush2.msra.mxu0 0.0
    %143 = vmatprep.subr.mxu0 0.0
    %144 = vmatpush2.msra.mxu0 0.0
    %145 = vmatprep.subr.mxu0 0.0
    %146 = vmatpush2.msra.mxu0 0.0
    %147 = vmatprep.subr.mxu0 0.0
    %148 = vmatpush2.msra.mxu0 0.0
    %149 = vmatprep.subr.mxu0 0.0
    %150 = vmatpush2.msra.mxu0 0.0
    %151 = vmatprep.subr.mxu0 0.0
    %152 = vmatpush2.msra.mxu0 0.0
    %153 = vmatprep.subr.mxu0 0.0
    %154 = vmatpush2.msra.mxu0 0.0
    %155 = vmatprep.subr.mxu0 0.0
    %156 = vmatpush2.msra.mxu0 0.0
    %157 = vmatprep.subr.mxu0 0.0
    %158 = vmatpush2.msra.mxu0 0.0
    %159 = vmatprep.mubr.f32.mxu0 0.0
    %160 = vmatmul.mubr.f32.gmra.mxu0 %v90
    %v161 = vpop.f32.mrf.mxu0
    %v162 = vadd.f32 0.0, %v161
    %v163 = vpop.f32.mrf.mxu0
    %164 = vmatprep.mubr.f32.mxu0 0.0
    %165 = vmatmul.mubr.f32.gmra.mxu0 %v93
    %v166 = vpop.f32.mrf.mxu0
    %v167 = vadd.f32 0.0, %v166
    %v168 = vpop.f32.mrf.mxu0
    %169 = vdwg.mxu0
    %v171 = vsel %vm88, %v78, 0
    %v174 = vsel %vm88, %v79, 0
    %176 = vmatprep.subr.mxu0 0.0
    %177 = vmatpush1.msra.mxu0 0.0
    %178 = vmatprep.subr.mxu0 0.0
    %179 = vmatpush1.msra.mxu0 0.0
    %180 = vmatprep.subr.mxu0 0.0
    %181 = vmatpush1.msra.mxu0 0.0
    %182 = vmatprep.subr.mxu0 0.0
    %183 = vmatpush1.msra.mxu0 0.0
    %184 = vmatprep.subr.mxu0 0.0
    %185 = vmatpush1.msra.mxu0 0.0
    %186 = vmatprep.subr.mxu0 0.0
    %187 = vmatpush1.msra.mxu0 0.0
    %188 = vmatprep.subr.mxu0 0.0
    %189 = vmatpush1.msra.mxu0 0.0
    %190 = vmatprep.subr.mxu0 0.0
    %191 = vmatpush1.msra.mxu0 0.0
    %192 = vmatprep.subr.mxu0 0.0
    %193 = vmatpush1.msra.mxu0 0.0
    %194 = vmatprep.subr.mxu0 0.0
    %195 = vmatpush1.msra.mxu0 0.0
    %196 = vmatprep.subr.mxu0 0.0
    %197 = vmatpush1.msra.mxu0 0.0
    %198 = vmatprep.subr.mxu0 0.0
    %199 = vmatpush1.msra.mxu0 0.0
    %200 = vmatprep.subr.mxu0 0.0
    %201 = vmatpush1.msra.mxu0 %v83
    %202 = vmatprep.subr.mxu0 0.0
    %203 = vmatpush1.msra.mxu0 %v82
    %204 = vmatprep.subr.mxu0 0.0
    %205 = vmatpush1.msra.mxu0 %v81
    %206 = vmatprep.subr.mxu0 0.0
    %207 = vmatpush1.msra.mxu0 %v80
    %208 = vmatprep.subr.mxu0 0.0
    %209 = vmatpush2.msra.mxu0 0.0
    %210 = vmatprep.subr.mxu0 0.0
    %211 = vmatpush2.msra.mxu0 0.0
    %212 = vmatprep.subr.mxu0 0.0
    %213 = vmatpush2.msra.mxu0 0.0
    %214 = vmatprep.subr.mxu0 0.0
    %215 = vmatpush2.msra.mxu0 0.0
    %216 = vmatprep.subr.mxu0 0.0
    %217 = vmatpush2.msra.mxu0 0.0
    %218 = vmatprep.subr.mxu0 0.0
    %219 = vmatpush2.msra.mxu0 0.0
    %220 = vmatprep.subr.mxu0 0.0
    %221 = vmatpush2.msra.mxu0 0.0
    %222 = vmatprep.subr.mxu0 0.0
    %223 = vmatpush2.msra.mxu0 0.0
    %224 = vmatprep.subr.mxu0 0.0
    %225 = vmatpush2.msra.mxu0 0.0
    %226 = vmatprep.subr.mxu0 0.0
    %227 = vmatpush2.msra.mxu0 0.0
    %228 = vmatprep.subr.mxu0 0.0
    %229 = vmatpush2.msra.mxu0 0.0
    %230 = vmatprep.subr.mxu0 0.0
    %231 = vmatpush2.msra.mxu0 0.0
    %232 = vmatprep.subr.mxu0 0.0
    %233 = vmatpush2.msra.mxu0 0.0
    %234 = vmatprep.subr.mxu0 0.0
    %235 = vmatpush2.msra.mxu0 0.0
    %236 = vmatprep.subr.mxu0 0.0
    %237 = vmatpush2.msra.mxu0 0.0
    %238 = vmatprep.subr.mxu0 0.0
    %239 = vmatpush2.msra.mxu0 0.0
    %240 = vmatprep.mubr.f32.mxu0 0.0
    %241 = vmatmul.mubr.f32.gmra.mxu0 %v171
    %v242 = vpop.f32.mrf.mxu0
    %v243 = vadd.f32 %v162, %v242
    %v244 = vpop.f32.mrf.mxu0
    %245 = vmatprep.mubr.f32.mxu0 0.0
    %246 = vmatmul.mubr.f32.gmra.mxu0 %v174
    %v247 = vpop.f32.mrf.mxu0
    %v248 = vadd.f32 %v167, %v247
    %v249 = vpop.f32.mrf.mxu0
    %250 = vdwg.mxu0
    %v251 = vld [vmem:[%s4] sm:$0x1]
    %v253 = vlaneseq
    %v254 = vshrl.u32 %v253, 7
    %v255 = vsub.s32 0, %v254
    %v256 = vrot.slane %v251, %v255
    %v258 = vadd.f32 %v243, %v256
    %v259 = vadd.f32 %v248, %v256
    %v260 = vxor.u32 %v258, 2147483648
    %v261 = vxor.u32 %v259, 2147483648
    %v262 = vmul.f32 %v260, 1.442695
    %v263 = vpow.pop %v262
    %v264 = vmul.f32 %v261, 1.442695
    %v265 = vpow.pop %v264
    %v266 = vadd.f32 %v263, 1.0
    %v267 = vadd.f32 %v265, 1.0
    %v268 = vrcp.pop %v266
    %v269 = vmul.f32 1.0, %v268
    %v270 = vrcp.pop %v267
    %v271 = vmul.f32 1.0, %v270
    %v272 = vsub.f32 %v78, %v76
    %v273 = vsub.f32 %v79, %v77
    %v274 = vmul.f32 %v272, %v269
    %v275 = vmul.f32 %v273, %v271
    %v276 = vadd.f32 %v76, %v274
    %v277 = vadd.f32 %v77, %v275
    %278 = vst.msk [vmem:[#allocation10] sm:$0xff] %vm88, %v276
    %279 = vst.msk [vmem:[#allocation10 + $0x8] sm:$0xff] %vm88, %v277
    // Predicated region
    $region38: #{tpu_custom_call.1} parent=1 // pred_check
      _
    $region39: #{tpu_custom_call.1} parent=1 // pred_check_branch
      %281 = sbr.rel (0) target = $region41
    $region40: #{tpu_custom_call.1} parent=1 // pred_region
      %s283 = ssub.s32 256, 256
      %284 = vsyncadd [#allocation4], %s283
      %s285 = sshll.u32 [#allocation10], 4
      %s286 = int_to_ptr.vmem [resolvable:$true] %s285
      %291 = dma.vmem_to_hbm [thread:$0]  %s286, 256, %s5, [#allocation4], 128, 128, 8
    $region41: #{tpu_custom_call.1} parent=1 // pred_fallthru
      _
    // Predicated region
    $region42: #{tpu_custom_call.1} parent=1 // pred_check
      _
    $region43: #{tpu_custom_call.1} parent=1 // pred_check_branch
      %293 = sbr.rel (0) target = $region45
    $region44: #{tpu_custom_call.1} parent=1 // pred_region
      %294 = dma.done [#allocation4], 256
    $region45: #{tpu_custom_call.1} parent=1 // pred_fallthru
      _
    %295 = vsyncpa [#allocation3], 1
    %296 = vsyncpa [#allocation6], 1
    %297 = vsyncpa [#allocation9], 1
    %298 = vsyncpa [#allocation4], 1

// kernel: tpu_custom_call.1
$region0: #{tpu_custom_call.1}
  #allocation0 [shape = 'u32[]', space=smem, size = 0x4, offset = 0x4, fixed_abs, tag = 'smem constant byte address 0x4 - core index']
  #allocation1 [shape = 'u32[144,128]{1,0:T(1,128)}', space=vmem, size = 0x12000, scoped, tag = 'internal scratch']
  %s0 = inlined_call_operand.hbm [shape: f32[16,32], index: 0, kind: input, shape index: {}]
  %s1 = inlined_call_operand.hbm [shape: f32[16,32], index: 1, kind: input, shape index: {}]
  %s2 = inlined_call_operand.hbm [shape: f32[32,32], index: 2, kind: input, shape index: {}]
  %s3 = inlined_call_operand.hbm [shape: f32[32,32], index: 3, kind: input, shape index: {}]
  %s4 = inlined_call_operand.vmem [shape: f32[1,32], index: 4, kind: input, shape index: {}]
  %s5 = inlined_call_operand.hbm [shape: f32[16,32], index: 5, kind: output, shape index: {}]
  %s6 = sld [smem:[#allocation0]]
  $region46: #{tpu_custom_call.1} parent=0
    _
  %s8 = ssub.s32 1, %s6
  %s9 = scalar_select 0, %s8, %s6
  $region1: #{tpu_custom_call.1} parent=0
    #allocation2 [shape = 'u8[8192]{0}', space=vmem, size = 0x2000, scoped, tag = 'input window, operand 0, single buffered']
    #allocation3 [shape = 's32[1]{0}', space=sflag, size = 0x4, scoped, tag = 'scoped memory for tpu_custom_call.1']
    #allocation4 [shape = 's32[1]{0}', space=sflag, size = 0x4, scoped, tag = 'scoped memory for tpu_custom_call.1']
    #allocation5 [shape = 'u8[8192]{0}', space=vmem, size = 0x2000, scoped, tag = 'input window, operand 1, single buffered']
    #allocation6 [shape = 's32[1]{0}', space=sflag, size = 0x4, scoped, tag = 'scoped memory for tpu_custom_call.1']
    #allocation7 [shape = 'u8[16384]{0}', space=vmem, size = 0x4000, scoped, tag = 'input window, operand 2, single buffered']
    #allocation8 [shape = 'u8[16384]{0}', space=vmem, size = 0x4000, scoped, tag = 'input window, operand 3, single buffered']
    #allocation9 [shape = 's32[1]{0}', space=sflag, size = 0x4, scoped, tag = 'scoped memory for tpu_custom_call.1']
    #allocation10 [shape = 'u8[8192]{0}', space=vmem, size = 0x2000, scoped, tag = 'output window, operand 0, single buffered']
    %10 = vsyncpa [#allocation3], 0
    %11 = vsyncpa [#allocation6], 0
    %12 = vsyncpa [#allocation9], 0
    %13 = vsyncpa [#allocation4], 0
    // Predicated region
    $region2: #{tpu_custom_call.1} parent=1 // pred_check
      _
    $region3: #{tpu_custom_call.1} parent=1 // pred_check_branch
      %15 = sbr.rel (0) target = $region5
    $region4: #{tpu_custom_call.1} parent=1 // pred_region
      %s17 = ssub.s32 256, 256
      %18 = vsyncadd [#allocation3], %s17
      %s19 = sshll.u32 [#allocation2], 4
      %s20 = int_to_ptr.vmem [resolvable:$true] %s19
      %25 = dma.hbm_to_vmem [thread:$0]  %s0, 256, %s20, [#allocation3], 128, 128, 8
    $region5: #{tpu_custom_call.1} parent=1 // pred_fallthru
      _
    // Predicated region
    $region6: #{tpu_custom_call.1} parent=1 // pred_check
      _
    $region7: #{tpu_custom_call.1} parent=1 // pred_check_branch
      %27 = sbr.rel (0) target = $region9
    $region8: #{tpu_custom_call.1} parent=1 // pred_region
      %s29 = ssub.s32 256, 256
      %30 = vsyncadd [#allocation6], %s29
      %s31 = sshll.u32 [#allocation5], 4
      %s32 = int_to_ptr.vmem [resolvable:$true] %s31
      %37 = dma.hbm_to_vmem [thread:$0]  %s1, 256, %s32, [#allocation6], 128, 128, 8
    $region9: #{tpu_custom_call.1} parent=1 // pred_fallthru
      _
    // Predicated region
    $region10: #{tpu_custom_call.1} parent=1 // pred_check
      _
    $region11: #{tpu_custom_call.1} parent=1 // pred_check_branch
      %39 = sbr.rel (0) target = $region13
    $region12: #{tpu_custom_call.1} parent=1 // pred_region
      %s41 = ssub.s32 512, 512
      %42 = vsyncadd [#allocation6], %s41
      %s43 = sshll.u32 [#allocation7], 4
      %s44 = int_to_ptr.vmem [resolvable:$true] %s43
      %49 = dma.hbm_to_vmem [thread:$0]  %s2, 512, %s44, [#allocation6], 128, 128, 8
    $region13: #{tpu_custom_call.1} parent=1 // pred_fallthru
      _
    // Predicated region
    $region14: #{tpu_custom_call.1} parent=1 // pred_check
      _
    $region15: #{tpu_custom_call.1} parent=1 // pred_check_branch
      %51 = sbr.rel (0) target = $region17
    $region16: #{tpu_custom_call.1} parent=1 // pred_region
      %s53 = ssub.s32 512, 512
      %54 = vsyncadd [#allocation9], %s53
      %s55 = sshll.u32 [#allocation8], 4
      %s56 = int_to_ptr.vmem [resolvable:$true] %s55
      %61 = dma.hbm_to_vmem [thread:$0]  %s3, 512, %s56, [#allocation9], 128, 128, 8
    $region17: #{tpu_custom_call.1} parent=1 // pred_fallthru
      _
    // Predicated region
    $region18: #{tpu_custom_call.1} parent=1 // pred_check
      _
    $region19: #{tpu_custom_call.1} parent=1 // pred_check_branch
      %63 = sbr.rel (0) target = $region21
    $region20: #{tpu_custom_call.1} parent=1 // pred_region
      _
    $region21: #{tpu_custom_call.1} parent=1 // pred_fallthru
      _
    // Predicated region
    $region22: #{tpu_custom_call.1} parent=1 // pred_check
      _
    $region23: #{tpu_custom_call.1} parent=1 // pred_check_branch
      %65 = sbr.rel (0) target = $region25
    $region24: #{tpu_custom_call.1} parent=1 // pred_region
      %66 = dma.done [#allocation3], 256
    $region25: #{tpu_custom_call.1} parent=1 // pred_fallthru
      _
    // Predicated region
    $region26: #{tpu_custom_call.1} parent=1 // pred_check
      _
    $region27: #{tpu_custom_call.1} parent=1 // pred_check_branch
      %68 = sbr.rel (0) target = $region29
    $region28: #{tpu_custom_call.1} parent=1 // pred_region
      %69 = dma.done [#allocation6], 256
    $region29: #{tpu_custom_call.1} parent=1 // pred_fallthru
      _
    // Predicated region
    $region30: #{tpu_custom_call.1} parent=1 // pred_check
      _
    $region31: #{tpu_custom_call.1} parent=1 // pred_check_branch
      %71 = sbr.rel (0) target = $region33
    $region32: #{tpu_custom_call.1} parent=1 // pred_region
      %72 = dma.done [#allocation6], 512
    $region33: #{tpu_custom_call.1} parent=1 // pred_fallthru
      _
    // Predicated region
    $region34: #{tpu_custom_call.1} parent=1 // pred_check
      _
    $region35: #{tpu_custom_call.1} parent=1 // pred_check_branch
      %74 = sbr.rel (0) target = $region37
    $region36: #{tpu_custom_call.1} parent=1 // pred_region
      %75 = dma.done [#allocation9], 512
    $region37: #{tpu_custom_call.1} parent=1 // pred_fallthru
      _
    %v76 = vld [vmem:[#allocation2] sm:$0xff]
    %v77 = vld [vmem:[#allocation2 + $0x8] sm:$0xff]
    %v78 = vld [vmem:[#allocation5] sm:$0xff]
    %v79 = vld [vmem:[#allocation5 + $0x8] sm:$0xff]
    %v80 = vld [vmem:[#allocation7] sm:$0xff]
    %v81 = vld [vmem:[#allocation7 + $0x8] sm:$0xff]
    %v82 = vld [vmem:[#allocation7 + $0x10] sm:$0xff]
    %v83 = vld [vmem:[#allocation7 + $0x18] sm:$0xff]
    %v84 = vld [vmem:[#allocation8] sm:$0xff]
    %v85 = vld [vmem:[#allocation8 + $0x8] sm:$0xff]
    %v86 = vld [vmem:[#allocation8 + $0x10] sm:$0xff]
    %v87 = vld [vmem:[#allocation8 + $0x18] sm:$0xff]
    %vm88 = vcmask 261120
    %v90 = vsel %vm88, %v76, 0
    %v93 = vsel %vm88, %v77, 0
    %95 = vmatprep.subr.mxu0 0.0
    %96 = vmatpush1.msra.mxu0 0.0
    %97 = vmatprep.subr.mxu0 0.0
    %98 = vmatpush1.msra.mxu0 0.0
    %99 = vmatprep.subr.mxu0 0.0
    %100 = vmatpush1.msra.mxu0 0.0
    %101 = vmatprep.subr.mxu0 0.0
    %102 = vmatpush1.msra.mxu0 0.0
    %103 = vmatprep.subr.mxu0 0.0
    %104 = vmatpush1.msra.mxu0 0.0
    %105 = vmatprep.subr.mxu0 0.0
    %106 = vmatpush1.msra.mxu0 0.0
    %107 = vmatprep.subr.mxu0 0.0
    %108 = vmatpush1.msra.mxu0 0.0
    %109 = vmatprep.subr.mxu0 0.0
    %110 = vmatpush1.msra.mxu0 0.0
    %111 = vmatprep.subr.mxu0 0.0
    %112 = vmatpush1.msra.mxu0 0.0
    %113 = vmatprep.subr.mxu0 0.0
    %114 = vmatpush1.msra.mxu0 0.0
    %115 = vmatprep.subr.mxu0 0.0
    %116 = vmatpush1.msra.mxu0 0.0
    %117 = vmatprep.subr.mxu0 0.0
    %118 = vmatpush1.msra.mxu0 0.0
    %119 = vmatprep.subr.mxu0 0.0
    %120 = vmatpush1.msra.mxu0 %v87
    %121 = vmatprep.subr.mxu0 0.0
    %122 = vmatpush1.msra.mxu0 %v86
    %123 = vmatprep.subr.mxu0 0.0
    %124 = vmatpush1.msra.mxu0 %v85
    %125 = vmatprep.subr.mxu0 0.0
    %126 = vmatpush1.msra.mxu0 %v84
    %127 = vmatprep.subr.mxu0 0.0
    %128 = vmatpush2.msra.mxu0 0.0
    %129 = vmatprep.subr.mxu0 0.0
    %130 = vmatpush2.msra.mxu0 0.0
    %131 = vmatprep.subr.mxu0 0.0
    %132 = vmatpush2.msra.mxu0 0.0
    %133 = vmatprep.subr.mxu0 0.0
    %134 = vmatpush2.msra.mxu0 0.0
    %135 = vmatprep.subr.mxu0 0.0
    %136 = vmatpush2.msra.mxu0 0.0
    %137 = vmatprep.subr.mxu0 0.0
    %138 = vmatpush2.msra.mxu0 0.0
    %139 = vmatprep.subr.mxu0 0.0
    %140 = vmatpush2.msra.mxu0 0.0
    %141 = vmatprep.subr.mxu0 0.0
    %142 = vmatpush2.msra.mxu0 0.0
    %143 = vmatprep.subr.mxu0 0.0
    %144 = vmatpush2.msra.mxu0 0.0
    %145 = vmatprep.subr.mxu0 0.0
    %146 = vmatpush2.msra.mxu0 0.0
    %147 = vmatprep.subr.mxu0 0.0
    %148 = vmatpush2.msra.mxu0 0.0
    %149 = vmatprep.subr.mxu0 0.0
    %150 = vmatpush2.msra.mxu0 0.0
    %151 = vmatprep.subr.mxu0 0.0
    %152 = vmatpush2.msra.mxu0 0.0
    %153 = vmatprep.subr.mxu0 0.0
    %154 = vmatpush2.msra.mxu0 0.0
    %155 = vmatprep.subr.mxu0 0.0
    %156 = vmatpush2.msra.mxu0 0.0
    %157 = vmatprep.subr.mxu0 0.0
    %158 = vmatpush2.msra.mxu0 0.0
    %159 = vmatprep.mubr.f32.mxu0 0.0
    %160 = vmatmul.mubr.f32.gmra.mxu0 %v90
    %v161 = vpop.f32.mrf.mxu0
    %v162 = vadd.f32 0.0, %v161
    %v163 = vpop.f32.mrf.mxu0
    %164 = vmatprep.mubr.f32.mxu0 0.0
    %165 = vmatmul.mubr.f32.gmra.mxu0 %v93
    %v166 = vpop.f32.mrf.mxu0
    %v167 = vadd.f32 0.0, %v166
    %v168 = vpop.f32.mrf.mxu0
    %169 = vdwg.mxu0
    %v171 = vsel %vm88, %v78, 0
    %v174 = vsel %vm88, %v79, 0
    %176 = vmatprep.subr.mxu0 0.0
    %177 = vmatpush1.msra.mxu0 0.0
    %178 = vmatprep.subr.mxu0 0.0
    %179 = vmatpush1.msra.mxu0 0.0
    %180 = vmatprep.subr.mxu0 0.0
    %181 = vmatpush1.msra.mxu0 0.0
    %182 = vmatprep.subr.mxu0 0.0
    %183 = vmatpush1.msra.mxu0 0.0
    %184 = vmatprep.subr.mxu0 0.0
    %185 = vmatpush1.msra.mxu0 0.0
    %186 = vmatprep.subr.mxu0 0.0
    %187 = vmatpush1.msra.mxu0 0.0
    %188 = vmatprep.subr.mxu0 0.0
    %189 = vmatpush1.msra.mxu0 0.0
    %190 = vmatprep.subr.mxu0 0.0
    %191 = vmatpush1.msra.mxu0 0.0
    %192 = vmatprep.subr.mxu0 0.0
    %193 = vmatpush1.msra.mxu0 0.0
    %194 = vmatprep.subr.mxu0 0.0
    %195 = vmatpush1.msra.mxu0 0.0
    %196 = vmatprep.subr.mxu0 0.0
    %197 = vmatpush1.msra.mxu0 0.0
    %198 = vmatprep.subr.mxu0 0.0
    %199 = vmatpush1.msra.mxu0 0.0
    %200 = vmatprep.subr.mxu0 0.0
    %201 = vmatpush1.msra.mxu0 %v83
    %202 = vmatprep.subr.mxu0 0.0
    %203 = vmatpush1.msra.mxu0 %v82
    %204 = vmatprep.subr.mxu0 0.0
    %205 = vmatpush1.msra.mxu0 %v81
    %206 = vmatprep.subr.mxu0 0.0
    %207 = vmatpush1.msra.mxu0 %v80
    %208 = vmatprep.subr.mxu0 0.0
    %209 = vmatpush2.msra.mxu0 0.0
    %210 = vmatprep.subr.mxu0 0.0
    %211 = vmatpush2.msra.mxu0 0.0
    %212 = vmatprep.subr.mxu0 0.0
    %213 = vmatpush2.msra.mxu0 0.0
    %214 = vmatprep.subr.mxu0 0.0
    %215 = vmatpush2.msra.mxu0 0.0
    %216 = vmatprep.subr.mxu0 0.0
    %217 = vmatpush2.msra.mxu0 0.0
    %218 = vmatprep.subr.mxu0 0.0
    %219 = vmatpush2.msra.mxu0 0.0
    %220 = vmatprep.subr.mxu0 0.0
    %221 = vmatpush2.msra.mxu0 0.0
    %222 = vmatprep.subr.mxu0 0.0
    %223 = vmatpush2.msra.mxu0 0.0
    %224 = vmatprep.subr.mxu0 0.0
    %225 = vmatpush2.msra.mxu0 0.0
    %226 = vmatprep.subr.mxu0 0.0
    %227 = vmatpush2.msra.mxu0 0.0
    %228 = vmatprep.subr.mxu0 0.0
    %229 = vmatpush2.msra.mxu0 0.0
    %230 = vmatprep.subr.mxu0 0.0
    %231 = vmatpush2.msra.mxu0 0.0
    %232 = vmatprep.subr.mxu0 0.0
    %233 = vmatpush2.msra.mxu0 0.0
    %234 = vmatprep.subr.mxu0 0.0
    %235 = vmatpush2.msra.mxu0 0.0
    %236 = vmatprep.subr.mxu0 0.0
    %237 = vmatpush2.msra.mxu0 0.0
    %238 = vmatprep.subr.mxu0 0.0
    %239 = vmatpush2.msra.mxu0 0.0
    %240 = vmatprep.mubr.f32.mxu0 0.0
    %241 = vmatmul.mubr.f32.gmra.mxu0 %v171
    %v242 = vpop.f32.mrf.mxu0
    %v243 = vadd.f32 %v162, %v242
    %v244 = vpop.f32.mrf.mxu0
    %245 = vmatprep.mubr.f32.mxu0 0.0
    %246 = vmatmul.mubr.f32.gmra.mxu0 %v174
    %v247 = vpop.f32.mrf.mxu0
    %v248 = vadd.f32 %v167, %v247
    %v249 = vpop.f32.mrf.mxu0
    %250 = vdwg.mxu0
    %v251 = vld [vmem:[%s4] sm:$0x1]
    %v253 = vlaneseq
    %v254 = vshrl.u32 %v253, 7
    %v255 = vsub.s32 0, %v254
    %v256 = vrot.slane %v251, %v255
    %v258 = vadd.f32 %v243, %v256
    %v259 = vadd.f32 %v248, %v256
    %v260 = vxor.u32 %v258, 2147483648
    %v261 = vxor.u32 %v259, 2147483648
    %v262 = vmul.f32 %v260, 1.442695
    %v263 = vpow.pop %v262
    %v264 = vmul.f32 %v261, 1.442695
    %v265 = vpow.pop %v264
    %v266 = vadd.f32 %v263, 1.0
    %v267 = vadd.f32 %v265, 1.0
    %v268 = vrcp.pop %v266
    %v269 = vmul.f32 1.0, %v268
    %v270 = vrcp.pop %v267
    %v271 = vmul.f32 1.0, %v270
    %v272 = vsub.f32 %v78, %v76
    %v273 = vsub.f32 %v79, %v77
    %v274 = vmul.f32 %v272, %v269
    %v275 = vmul.f32 %v273, %v271
    %v276 = vadd.f32 %v76, %v274
    %v277 = vadd.f32 %v77, %v275
    %278 = vst.msk [vmem:[#allocation10] sm:$0xff] %vm88, %v276
    %279 = vst.msk [vmem:[#allocation10 + $0x8] sm:$0xff] %vm88, %v277
    // Predicated region
    $region38: #{tpu_custom_call.1} parent=1 // pred_check
      _
    $region39: #{tpu_custom_call.1} parent=1 // pred_check_branch
      %281 = sbr.rel (0) target = $region41
    $region40: #{tpu_custom_call.1} parent=1 // pred_region
      %s283 = ssub.s32 256, 256
      %284 = vsyncadd [#allocation4], %s283
      %s285 = sshll.u32 [#allocation10], 4
      %s286 = int_to_ptr.vmem [resolvable:$true] %s285
      %291 = dma.vmem_to_hbm [thread:$0]  %s286, 256, %s5, [#allocation4], 128, 128, 8
    $region41: #{tpu_custom_call.1} parent=1 // pred_fallthru
      _
    // Predicated region
    $region42: #{tpu_custom_call.1} parent=1 // pred_check
      _
    $region43: #{tpu_custom_call.1} parent=1 // pred_check_branch
      %293 = sbr.rel (0) target = $region45
    $region44: #{tpu_custom_call.1} parent=1 // pred_region
      %294 = dma.done [#allocation4], 256
    $region45: #{tpu_custom_call.1} parent=1 // pred_fallthru
      _
    %295 = vsyncpa [#allocation3], 1
    %296 = vsyncpa [#allocation6], 1
    %297 = vsyncpa [#allocation9], 1
    %298 = vsyncpa [#allocation4], 1

</llo_original>
